<compile_context>
chip_gen: v6e
topology: v6e:2x2x1
jax: 0.10.0
libtpu: 0.0.40
codegen_flags: <defaults>
</compile_context>

<pallas_src>
import functools

import numpy as np

import jax
import jax.numpy as jnp
from jax.experimental import pallas as pl
from jax.experimental.pallas import tpu as pltpu


# ----------------------------------------------------------------------------
# fc1: out = act(x @ W^T + b), single block (layer is tiny).
# ----------------------------------------------------------------------------
def _linear_kernel(x_ref, w_ref, b_ref, o_ref, *, activation):
    acc = jnp.dot(x_ref[...], w_ref[...], preferred_element_type=jnp.float32)
    acc = acc + b_ref[...]
    if activation == "relu":
        acc = jnp.maximum(acc, 0.0)
    o_ref[...] = acc.astype(o_ref.dtype)


def linear(x, weight, bias, *, activation=None):
    """x: (B, D_in); weight: (D_out, D_in) torch layout; bias: (D_out,)."""
    B, D_in = x.shape
    D_out = weight.shape[0]
    return pl.pallas_call(
        functools.partial(_linear_kernel, activation=activation),
        out_shape=jax.ShapeDtypeStruct((B, D_out), x.dtype),
    )(x, jnp.transpose(weight), bias.reshape(1, D_out))


# ----------------------------------------------------------------------------
# Length-tile chooser: lane-aligned, >=2 grid steps for big layers, always legal.
# ----------------------------------------------------------------------------
def _choose_length_tile(M):
    if M <= 256:
        return M                                  # single full-length tile (always legal)
    for t in (2048, 1024, 512, 256, 128):
        if M % t == 0 and M // t >= 2:
            return t
    return M                                      # fallback: single full-length tile


# ----------------------------------------------------------------------------
# Fused nearest-upsample(U) -> zero-pad -> Conv1d(stride=1) -> bias -> activation,
# computed polyphase on the original (non-upsampled) signal.
# ----------------------------------------------------------------------------
def _poly_conv_kernel(x_ref, w_ref, b_ref, o_ref, *, Win, Kp, activation):
    # x_ref: (1, C_in, L_h) full padded row; w_ref: (Kp, U*C_out, C_in);
    # b_ref: (U*C_out, 1);  o_ref: (1, U*C_out, Win)  [phase-major rows p*C_out + o].
    j = pl.program_id(1)
    start = pl.multiple_of(j * Win, Win)
    x_win = x_ref[0, :, pl.ds(start, Win + Kp - 1)]           # (C_in, Win+Kp-1)

    rows = w_ref.shape[1]
    acc = jnp.zeros((rows, Win), jnp.float32)
    for d in range(Kp):                                       # static, small (7 for conv layers)
        acc = acc + jnp.dot(w_ref[d], x_win[:, d:d + Win],
                            preferred_element_type=jnp.float32)
    acc = acc + b_ref[...]
    if activation == "relu":
        acc = jnp.maximum(acc, 0.0)
    elif activation == "tanh":
        acc = jnp.tanh(acc)
    o_ref[0] = acc.astype(o_ref.dtype)                        # lane-dense store


def upsample_conv1d(x, weight, bias, *, upsample, pad_left, pad_right, activation=None):
    """x: (N, C_in, L) NCL; weight: (C_out, C_in, K) torch layout; bias: (C_out,).

    Returns (N, C_out, L_out) with L_out = U*L + pad_left + pad_right - K + 1.
    """
    N, C_in, L = x.shape
    C_out, c_in_w, K = weight.shape
    assert c_in_w == C_in
    U = int(upsample) if upsample else 1
    L_out = U * L + pad_left + pad_right - K + 1
    assert L_out % U == 0, "polyphase path needs U | L_out"
    M = L_out // U                                            # outputs per phase

    # Polyphase offsets: output t = U*m + p reads x[:, m + (p + k - pad_left)//U].
    offs = np.array([[(p + k - pad_left) // U for k in range(K)] for p in range(U)])
    d_min, d_max = int(offs.min()), int(offs.max())
    Kp = d_max - d_min + 1

    # Pre-sum original taps that land on the same source sample, per phase (exact).
    scat = np.zeros((U, K, Kp), dtype=np.float32)
    scat[np.arange(U)[:, None], np.arange(K)[None, :], offs - d_min] = 1.0
    w_phase = jnp.einsum("ock,pkd->pocd", weight, jnp.asarray(scat, weight.dtype))
    w_tap = jnp.transpose(w_phase, (3, 0, 1, 2)).reshape(Kp, U * C_out, C_in)
    b_big = jnp.tile(bias, U).reshape(U * C_out, 1)

    # Tiny halo in source coordinates stands in for ConstantPad1d of the upsampled signal.
    halo_l = -d_min
    halo_r = max(0, M + d_max - L)
    x_h = jnp.pad(x, ((0, 0), (0, 0), (halo_l, halo_r)))
    L_h = L + halo_l + halo_r

    Win = _choose_length_tile(M)
    n_tiles = M // Win

    itemsize = x.dtype.itemsize
    cost = pl.CostEstimate(
        flops=2 * N * L_out * C_out * C_in * Kp,
        transcendentals=(N * L_out * C_out) if activation == "tanh" else 0,
        bytes_accessed=itemsize * (N * C_in * L_h + w_tap.size + b_big.size
                                   + N * U * C_out * M),
    )

    out_k = pl.pallas_call(
        functools.partial(_poly_conv_kernel, Win=Win, Kp=Kp, activation=activation),
        out_shape=jax.ShapeDtypeStruct((N, U * C_out, M), x.dtype),
        grid=(N, n_tiles),
        in_specs=[
            pl.BlockSpec((1, C_in, L_h), lambda n, j: (n, 0, 0)),
            pl.BlockSpec((Kp, U * C_out, C_in), lambda n, j: (0, 0, 0)),
            pl.BlockSpec((U * C_out, 1), lambda n, j: (0, 0)),
        ],
        out_specs=pl.BlockSpec((1, U * C_out, Win), lambda n, j: (n, 0, j)),
        compiler_params=pltpu.CompilerParams(
            dimension_semantics=("parallel", "parallel")),
        cost_estimate=cost,
    )(x_h, w_tap, b_big)

    if U == 1:
        return out_k
    # De-interleave phase-major rows: (N, U*C_out, M) -> (N, C_out, U*M).  Tiny XLA
    # layout op on the (small) activations; keeps every kernel store lane-dense.
    return (out_k.reshape(N, U, C_out, M)
                 .transpose(0, 2, 3, 1)
                 .reshape(N, C_out, L_out))


# ----------------------------------------------------------------------------
# Post-processing FIR (C_in = C_out = 1), 8-sublane-packed.
# ----------------------------------------------------------------------------
def _postproc_kernel(x_ref, w_ref, b_ref, o_ref, *, Tc, K):
    # x_ref: (1, 8, Lc+K-1); w_ref: (K, 8, 1); b_ref: (8, 1); o_ref: (1, 8, Tc).
    j = pl.program_id(1)
    start = pl.multiple_of(j * Tc, Tc)
    xw = x_ref[0, :, pl.ds(start, Tc + K - 1)]                # (8, Tc+K-1): full sublanes
    acc = jnp.zeros((8, Tc), jnp.float32)
    for k in range(K):                                        # static taps
        acc = acc + w_ref[k] * xw[:, k:k + Tc]
    acc = acc + b_ref[...]
    o_ref[0] = acc.astype(o_ref.dtype)


def postproc_conv1d(x, weight, bias, *, pad_left, pad_right):
    N, C, L = x.shape
    C_out, c_in_w, K = weight.shape
    assert C == 1 and C_out == 1 and c_in_w == 1
    L_out = L + pad_left + pad_right - K + 1
    R = 8
    assert L_out % R == 0, "sublane-packed post-proc path needs 8 | L_out"
    Lc = L_out // R

    # Zero-pad once, then 8 overlapping row-windows: sublane row r owns the r-th eighth
    # of the output, so the final un-pack is a free row-major reshape.
    xp = jnp.pad(x[:, 0, :], ((0, 0), (pad_left, pad_right)))  # (N, L_out + K - 1)
    x8 = jnp.stack([xp[:, r * Lc:r * Lc + Lc + K - 1] for r in range(R)], axis=1)

    w8 = jnp.broadcast_to(weight.reshape(K, 1, 1), (K, R, 1))
    b8 = jnp.broadcast_to(bias.reshape(1, 1), (R, 1))

    Tc = _choose_length_tile(Lc)
    n_tiles = Lc // Tc

    cost = pl.CostEstimate(
        flops=2 * N * L_out * K, transcendentals=0,
        bytes_accessed=x.dtype.itemsize * (N * R * (Lc + K - 1) + w8.size + N * L_out))

    out8 = pl.pallas_call(
        functools.partial(_postproc_kernel, Tc=Tc, K=K),
        out_shape=jax.ShapeDtypeStruct((N, R, Lc), x.dtype),
        grid=(N, n_tiles),
        in_specs=[
            pl.BlockSpec((1, R, Lc + K - 1), lambda n, j: (n, 0, 0)),
            pl.BlockSpec((K, R, 1), lambda n, j: (0, 0, 0)),
            pl.BlockSpec((R, 1), lambda n, j: (0, 0)),
        ],
        out_specs=pl.BlockSpec((1, R, Tc), lambda n, j: (n, 0, j)),
        compiler_params=pltpu.CompilerParams(
            dimension_semantics=("parallel", "parallel")),
        cost_estimate=cost,
    )(x8, w8, b8)
    return out8.reshape(N, 1, L_out)


# ----------------------------------------------------------------------------
# Full generator forward (upsample=True branch of WaveGANGenerator).
# ----------------------------------------------------------------------------
def wavegan_generator_forward(z, params, *, model_size, num_channels,
                              post_proc_filt_len):
    B = z.shape[0]
    x = linear(z, params["fc_w"], params["fc_b"], activation="relu")
    x = x.reshape(B, 16 * model_size, 16)                     # torch .view(-1, 16*ms, 16)

    acts = ("relu", "relu", "relu", "relu", "tanh")
    for i in range(5):
        w = params[f"conv{i + 1}_w"]
        b = params[f"conv{i + 1}_b"]
        K = w.shape[-1]
        x = upsample_conv1d(x, w, b, upsample=4, pad_left=K // 2,
                            pad_right=K // 2, activation=acts[i])

    if post_proc_filt_len:
        if post_proc_filt_len % 2 == 0:
            pad_l = post_proc_filt_len // 2
            pad_r = pad_l - 1
        else:
            pad_l = pad_r = (post_proc_filt_len - 1) // 2
        x = postproc_conv1d(x, params["pp_w"], params["pp_b"],
                            pad_left=pad_l, pad_right=pad_r)
    return x


# ----------------------------------------------------------------------------
# Pure-JAX reference matching the PyTorch module.
# ----------------------------------------------------------------------------
def _reference_forward(z, params, *, model_size, num_channels, post_proc_filt_len):
    def conv1d_ncl(x, w, b):
        out = jax.lax.conv_general_dilated(
            x, w, window_strides=(1,), padding="VALID",
            dimension_numbers=("NCH", "OIH", "NCH"))
        return out + b[None, :, None]

    B = z.shape[0]
    x = z @ params["fc_w"].T + params["fc_b"]
    x = x.reshape(B, 16 * model_size, 16)
    x = jnp.maximum(x, 0.0)
    for i in range(5):
        w = params[f"conv{i + 1}_w"]
        b = params[f"conv{i + 1}_b"]
        K = w.shape[-1]
        x = jnp.repeat(x, 4, axis=-1)
        x = jnp.pad(x, ((0, 0), (0, 0), (K // 2, K // 2)))
        x = conv1d_ncl(x, w, b)
        x = jnp.maximum(x, 0.0) if i < 4 else jnp.tanh(x)
    if post_proc_filt_len:
        if post_proc_filt_len % 2 == 0:
            pad_l = post_proc_filt_len // 2
            pad_r = pad_l - 1
        else:
            pad_l = pad_r = (post_proc_filt_len - 1) // 2
        x = jnp.pad(x, ((0, 0), (0, 0), (pad_l, pad_r)))
        x = conv1d_ncl(x, params["pp_w"], params["pp_b"])
    return x


if __name__ == "__main__":
    # Small WaveGANGenerator config (architecture shape fixed by the module).
    model_size = 8
    num_channels = 1
    latent_dim = 32
    post_proc_filt_len = 64
    batch = 2
    kernel_size = 25

    key = jax.random.PRNGKey(0)
    keys = jax.random.split(key, 15)

    params = {}
    d_out = 256 * model_size
    bound = 1.0 / (latent_dim ** 0.5)                         # torch Linear default init
    params["fc_w"] = jax.random.uniform(keys[0], (d_out, latent_dim),
                                        jnp.float32, -bound, bound)
    params["fc_b"] = jax.random.uniform(keys[1], (d_out,), jnp.float32,
                                        -bound, bound)

    chans = [16 * model_size, 8 * model_size, 4 * model_size,
             2 * model_size, model_size, num_channels]
    for i in range(5):
        c_in, c_out = chans[i], chans[i + 1]
        bound = 1.0 / ((c_in * kernel_size) ** 0.5)           # torch Conv1d default init
        params[f"conv{i + 1}_w"] = jax.random.uniform(
            keys[2 + 2 * i], (c_out, c_in, kernel_size), jnp.float32, -bound, bound)
        params[f"conv{i + 1}_b"] = jax.random.uniform(
            keys[3 + 2 * i], (c_out,), jnp.float32, -bound, bound)

    bound = 1.0 / ((num_channels * post_proc_filt_len) ** 0.5)
    params["pp_w"] = jax.random.uniform(
        keys[12], (num_channels, num_channels, post_proc_filt_len),
        jnp.float32, -bound, bound)
    params["pp_b"] = jax.random.uniform(keys[13], (num_channels,), jnp.float32,
                                        -bound, bound)

    z = jax.random.normal(keys[14], (batch, latent_dim), jnp.float32)

    out = wavegan_generator_forward(
        z, params, model_size=model_size, num_channels=num_channels,
        post_proc_filt_len=post_proc_filt_len)
    out = jax.block_until_ready(out)

    ref = _reference_forward(
        z, params, model_size=model_size, num_channels=num_channels,
        post_proc_filt_len=post_proc_filt_len)

    assert out.shape == (batch, num_channels, 16 * 4 ** 5), out.shape
    assert jnp.allclose(out, ref, atol=1e-3, rtol=1e-3), float(
        jnp.max(jnp.abs(out - ref)))
    print("KERNEL_OK")
</pallas_src>

<mosaic_0001>
module attributes {stable_mosaic.version = 11 : i64} {
  func.func @_linear_kernel(%arg0: memref<2x32xf32, #tpu.memory_space<vmem>>, %arg1: memref<32x2048xf32, #tpu.memory_space<vmem>>, %arg2: memref<1x2048xf32, #tpu.memory_space<vmem>>, %arg3: memref<2x2048xf32, #tpu.memory_space<vmem>>) attributes {dimension_semantics = [], scalar_prefetch = 0 : i64, scratch_operands = 0 : i64, tpu.core_type = #tpu.core_type<tc>} {
    %c0 = arith.constant 0 : index
    %c0_0 = arith.constant 0 : index
    %0 = vector.load %arg0[%c0, %c0_0] : memref<2x32xf32, #tpu.memory_space<vmem>>, vector<2x32xf32>
    %c0_1 = arith.constant 0 : index
    %c0_2 = arith.constant 0 : index
    %1 = vector.load %arg1[%c0_1, %c0_2] : memref<32x2048xf32, #tpu.memory_space<vmem>>, vector<32x2048xf32>
    %cst = arith.constant dense<0.000000e+00> : vector<2x2048xf32>
    %2 = tpu.matmul %0, %1, %cst {dimension_numbers = #tpu.dot_dimension_numbers<[1], [0], [0], [1], [0, 0, 1, 1], [], []>} : vector<2x32xf32>, vector<32x2048xf32>, vector<2x2048xf32> -> vector<2x2048xf32>
    %c0_3 = arith.constant 0 : index
    %c0_4 = arith.constant 0 : index
    %3 = vector.load %arg2[%c0_3, %c0_4] : memref<1x2048xf32, #tpu.memory_space<vmem>>, vector<1x2048xf32>
    %4 = vector.broadcast %3 : vector<1x2048xf32> to vector<2x2048xf32>
    %5 = arith.addf %2, %4 : vector<2x2048xf32>
    %cst_5 = arith.constant 0.000000e+00 : f32
    %6 = vector.broadcast %cst_5 : f32 to vector<2x2048xf32>
    %7 = arith.maximumf %5, %6 : vector<2x2048xf32>
    %c0_6 = arith.constant 0 : index
    %c0_7 = arith.constant 0 : index
    %8 = vector.load %arg3[%c0_6, %c0_7] : memref<2x2048xf32, #tpu.memory_space<vmem>>, vector<2x2048xf32>
    tpu.vector_store %arg3[%c0_6, %c0_7], %7 {strides = array<i32>} : memref<2x2048xf32, #tpu.memory_space<vmem>>, vector<2x2048xf32>,
    return
  }
}

</mosaic_0001>

<llo_original>
// kernel: tpu_custom_call.1
$region0: #{tpu_custom_call.1}
  #allocation0 [shape = 'u32[]', space=smem, size = 0x4, offset = 0x4, fixed_abs, tag = 'smem constant byte address 0x4 - core index']
  #allocation1 [shape = 'u32[144,128]{1,0:T(1,128)}', space=vmem, size = 0x12000, scoped, tag = 'internal scratch']
  %s0 = inlined_call_operand.hbm [shape: f32[2,32], index: 0, kind: input, shape index: {}]
  %s1 = inlined_call_operand.hbm [shape: f32[32,2048], index: 1, kind: input, shape index: {}]
  %s2 = inlined_call_operand.hbm [shape: f32[1,2048], index: 2, kind: input, shape index: {}]
  %s3 = inlined_call_operand.hbm [shape: f32[2,2048], index: 3, kind: output, shape index: {}]
  %s4 = sld [smem:[#allocation0]]
  $region34: #{tpu_custom_call.1} parent=0
    _
  %s6 = ssub.s32 1, %s4
  %s7 = scalar_select 0, %s6, %s4
  $region1: #{tpu_custom_call.1} parent=0
    #allocation2 [shape = 'u8[1024]{0}', space=vmem, size = 0x400, scoped, tag = 'input window, operand 0, single buffered']
    #allocation3 [shape = 's32[1]{0}', space=sflag, size = 0x4, scoped, tag = 'scoped memory for tpu_custom_call.1']
    #allocation4 [shape = 's32[1]{0}', space=sflag, size = 0x4, scoped, tag = 'scoped memory for tpu_custom_call.1']
    #allocation5 [shape = 'u8[262144]{0}', space=vmem, size = 0x40000, scoped, tag = 'input window, operand 1, single buffered']
    #allocation6 [shape = 's32[1]{0}', space=sflag, size = 0x4, scoped, tag = 'scoped memory for tpu_custom_call.1']
    #allocation7 [shape = 'u8[8192]{0}', space=vmem, size = 0x2000, scoped, tag = 'input window, operand 2, single buffered']
    #allocation8 [shape = 'u8[16384]{0}', space=vmem, size = 0x4000, scoped, tag = 'output window, operand 0, single buffered']
    %8 = vsyncpa [#allocation3], 0
    %9 = vsyncpa [#allocation6], 0
    %10 = vsyncpa [#allocation4], 0
    // Predicated region
    $region2: #{tpu_custom_call.1} parent=1 // pred_check
      _
    $region3: #{tpu_custom_call.1} parent=1 // pred_check_branch
      %12 = sbr.rel (0) target = $region5
    $region4: #{tpu_custom_call.1} parent=1 // pred_region
      %s14 = ssub.s32 32, 32
      %15 = vsyncadd [#allocation3], %s14
      %s17 = sshll.u32 [#allocation2], 4
      %s18 = int_to_ptr.vmem [resolvable:$true] %s17
      %20 = dma.hbm_to_vmem [thread:$0]  %s0, 32, %s18, [#allocation3]
    $region5: #{tpu_custom_call.1} parent=1 // pred_fallthru
      _
    // Predicated region
    $region6: #{tpu_custom_call.1} parent=1 // pred_check
      _
    $region7: #{tpu_custom_call.1} parent=1 // pred_check_branch
      %22 = sbr.rel (0) target = $region9
    $region8: #{tpu_custom_call.1} parent=1 // pred_region
      %s24 = ssub.s32 8192, 8192
      %25 = vsyncadd [#allocation6], %s24
      %s26 = sshll.u32 [#allocation5], 4
      %s27 = int_to_ptr.vmem [resolvable:$true] %s26
      %32 = dma.hbm_to_vmem [thread:$0]  %s1, 8192, %s27, [#allocation6], 2048, 2048, 128
    $region9: #{tpu_custom_call.1} parent=1 // pred_fallthru
      _
    // Predicated region
    $region10: #{tpu_custom_call.1} parent=1 // pred_check
      _
    $region11: #{tpu_custom_call.1} parent=1 // pred_check_branch
      %34 = sbr.rel (0) target = $region13
    $region12: #{tpu_custom_call.1} parent=1 // pred_region
      %s36 = ssub.s32 256, 256
      %37 = vsyncadd [#allocation6], %s36
      %s39 = sshll.u32 [#allocation7], 4
      %s40 = int_to_ptr.vmem [resolvable:$true] %s39
      %42 = dma.hbm_to_vmem [thread:$0]  %s2, 256, %s40, [#allocation6]
    $region13: #{tpu_custom_call.1} parent=1 // pred_fallthru
      _
    // Predicated region
    $region14: #{tpu_custom_call.1} parent=1 // pred_check
      _
    $region15: #{tpu_custom_call.1} parent=1 // pred_check_branch
      %44 = sbr.rel (0) target = $region17
    $region16: #{tpu_custom_call.1} parent=1 // pred_region
      %45 = dma.done [#allocation3], 32
    $region17: #{tpu_custom_call.1} parent=1 // pred_fallthru
      _
    // Predicated region
    $region18: #{tpu_custom_call.1} parent=1 // pred_check
      _
    $region19: #{tpu_custom_call.1} parent=1 // pred_check_branch
      %47 = sbr.rel (0) target = $region21
    $region20: #{tpu_custom_call.1} parent=1 // pred_region
      %48 = dma.done [#allocation6], 8192
    $region21: #{tpu_custom_call.1} parent=1 // pred_fallthru
      _
    // Predicated region
    $region22: #{tpu_custom_call.1} parent=1 // pred_check
      _
    $region23: #{tpu_custom_call.1} parent=1 // pred_check_branch
      %50 = sbr.rel (0) target = $region25
    $region24: #{tpu_custom_call.1} parent=1 // pred_region
      %51 = dma.done [#allocation6], 256
    $region25: #{tpu_custom_call.1} parent=1 // pred_fallthru
      _
    %v52 = vld [vmem:[#allocation2] sm:$0x3]
    %v53 = vld [vmem:[#allocation5] sm:$0xff]
    %v54 = vld [vmem:[#allocation5 + $0x8] sm:$0xff]
    %v55 = vld [vmem:[#allocation5 + $0x10] sm:$0xff]
    %v56 = vld [vmem:[#allocation5 + $0x18] sm:$0xff]
    %v57 = vld [vmem:[#allocation5 + $0x20] sm:$0xff]
    %v58 = vld [vmem:[#allocation5 + $0x28] sm:$0xff]
    %v59 = vld [vmem:[#allocation5 + $0x30] sm:$0xff]
    %v60 = vld [vmem:[#allocation5 + $0x38] sm:$0xff]
    %v61 = vld [vmem:[#allocation5 + $0x40] sm:$0xff]
    %v62 = vld [vmem:[#allocation5 + $0x48] sm:$0xff]
    %v63 = vld [vmem:[#allocation5 + $0x50] sm:$0xff]
    %v64 = vld [vmem:[#allocation5 + $0x58] sm:$0xff]
    %v65 = vld [vmem:[#allocation5 + $0x60] sm:$0xff]
    %v66 = vld [vmem:[#allocation5 + $0x68] sm:$0xff]
    %v67 = vld [vmem:[#allocation5 + $0x70] sm:$0xff]
    %v68 = vld [vmem:[#allocation5 + $0x78] sm:$0xff]
    %v69 = vld [vmem:[#allocation5 + $0x80] sm:$0xff]
    %v70 = vld [vmem:[#allocation5 + $0x88] sm:$0xff]
    %v71 = vld [vmem:[#allocation5 + $0x90] sm:$0xff]
    %v72 = vld [vmem:[#allocation5 + $0x98] sm:$0xff]
    %v73 = vld [vmem:[#allocation5 + $0xa0] sm:$0xff]
    %v74 = vld [vmem:[#allocation5 + $0xa8] sm:$0xff]
    %v75 = vld [vmem:[#allocation5 + $0xb0] sm:$0xff]
    %v76 = vld [vmem:[#allocation5 + $0xb8] sm:$0xff]
    %v77 = vld [vmem:[#allocation5 + $0xc0] sm:$0xff]
    %v78 = vld [vmem:[#allocation5 + $0xc8] sm:$0xff]
    %v79 = vld [vmem:[#allocation5 + $0xd0] sm:$0xff]
    %v80 = vld [vmem:[#allocation5 + $0xd8] sm:$0xff]
    %v81 = vld [vmem:[#allocation5 + $0xe0] sm:$0xff]
    %v82 = vld [vmem:[#allocation5 + $0xe8] sm:$0xff]
    %v83 = vld [vmem:[#allocation5 + $0xf0] sm:$0xff]
    %v84 = vld [vmem:[#allocation5 + $0xf8] sm:$0xff]
    %v85 = vld [vmem:[#allocation5 + $0x100] sm:$0xff]
    %v86 = vld [vmem:[#allocation5 + $0x108] sm:$0xff]
    %v87 = vld [vmem:[#allocation5 + $0x110] sm:$0xff]
    %v88 = vld [vmem:[#allocation5 + $0x118] sm:$0xff]
    %v89 = vld [vmem:[#allocation5 + $0x120] sm:$0xff]
    %v90 = vld [vmem:[#allocation5 + $0x128] sm:$0xff]
    %v91 = vld [vmem:[#allocation5 + $0x130] sm:$0xff]
    %v92 = vld [vmem:[#allocation5 + $0x138] sm:$0xff]
    %v93 = vld [vmem:[#allocation5 + $0x140] sm:$0xff]
    %v94 = vld [vmem:[#allocation5 + $0x148] sm:$0xff]
    %v95 = vld [vmem:[#allocation5 + $0x150] sm:$0xff]
    %v96 = vld [vmem:[#allocation5 + $0x158] sm:$0xff]
    %v97 = vld [vmem:[#allocation5 + $0x160] sm:$0xff]
    %v98 = vld [vmem:[#allocation5 + $0x168] sm:$0xff]
    %v99 = vld [vmem:[#allocation5 + $0x170] sm:$0xff]
    %v100 = vld [vmem:[#allocation5 + $0x178] sm:$0xff]
    %v101 = vld [vmem:[#allocation5 + $0x180] sm:$0xff]
    %v102 = vld [vmem:[#allocation5 + $0x188] sm:$0xff]
    %v103 = vld [vmem:[#allocation5 + $0x190] sm:$0xff]
    %v104 = vld [vmem:[#allocation5 + $0x198] sm:$0xff]
    %v105 = vld [vmem:[#allocation5 + $0x1a0] sm:$0xff]
    %v106 = vld [vmem:[#allocation5 + $0x1a8] sm:$0xff]
    %v107 = vld [vmem:[#allocation5 + $0x1b0] sm:$0xff]
    %v108 = vld [vmem:[#allocation5 + $0x1b8] sm:$0xff]
    %v109 = vld [vmem:[#allocation5 + $0x1c0] sm:$0xff]
    %v110 = vld [vmem:[#allocation5 + $0x1c8] sm:$0xff]
    %v111 = vld [vmem:[#allocation5 + $0x1d0] sm:$0xff]
    %v112 = vld [vmem:[#allocation5 + $0x1d8] sm:$0xff]
    %v113 = vld [vmem:[#allocation5 + $0x1e0] sm:$0xff]
    %v114 = vld [vmem:[#allocation5 + $0x1e8] sm:$0xff]
    %v115 = vld [vmem:[#allocation5 + $0x1f0] sm:$0xff]
    %v116 = vld [vmem:[#allocation5 + $0x1f8] sm:$0xff]
    %v117 = vld [vmem:[#allocation7] sm:$0xff]
    %v118 = vld [vmem:[#allocation7 + $0x8] sm:$0xff]
    %v121 = vlaneseq
    %v122 = vshrl.u32 %v121, 7
    %v123 = vsub.s32 0, %v122
    %v124 = vrot.slane %v117, %v123
    %v125 = vlaneseq
    %v126 = vshrl.u32 %v125, 7
    %v127 = vsub.s32 1, %v126
    %v128 = vrot.slane %v117, %v127
    %v129 = vlaneseq
    %v130 = vshrl.u32 %v129, 7
    %v131 = vsub.s32 2, %v130
    %v132 = vrot.slane %v117, %v131
    %v133 = vlaneseq
    %v134 = vshrl.u32 %v133, 7
    %v135 = vsub.s32 3, %v134
    %v136 = vrot.slane %v117, %v135
    %v137 = vlaneseq
    %v138 = vshrl.u32 %v137, 7
    %v139 = vsub.s32 4, %v138
    %v140 = vrot.slane %v117, %v139
    %v141 = vlaneseq
    %v142 = vshrl.u32 %v141, 7
    %v143 = vsub.s32 5, %v142
    %v144 = vrot.slane %v117, %v143
    %v145 = vlaneseq
    %v146 = vshrl.u32 %v145, 7
    %v147 = vsub.s32 6, %v146
    %v148 = vrot.slane %v117, %v147
    %v149 = vlaneseq
    %v150 = vshrl.u32 %v149, 7
    %v151 = vsub.s32 7, %v150
    %v152 = vrot.slane %v117, %v151
    %v153 = vlaneseq
    %v154 = vshrl.u32 %v153, 7
    %v155 = vsub.s32 0, %v154
    %v156 = vrot.slane %v118, %v155
    %v157 = vlaneseq
    %v158 = vshrl.u32 %v157, 7
    %v159 = vsub.s32 1, %v158
    %v160 = vrot.slane %v118, %v159
    %v161 = vlaneseq
    %v162 = vshrl.u32 %v161, 7
    %v163 = vsub.s32 2, %v162
    %v164 = vrot.slane %v118, %v163
    %v165 = vlaneseq
    %v166 = vshrl.u32 %v165, 7
    %v167 = vsub.s32 3, %v166
    %v168 = vrot.slane %v118, %v167
    %v169 = vlaneseq
    %v170 = vshrl.u32 %v169, 7
    %v171 = vsub.s32 4, %v170
    %v172 = vrot.slane %v118, %v171
    %v173 = vlaneseq
    %v174 = vshrl.u32 %v173, 7
    %v175 = vsub.s32 5, %v174
    %v176 = vrot.slane %v118, %v175
    %v177 = vlaneseq
    %v178 = vshrl.u32 %v177, 7
    %v179 = vsub.s32 6, %v178
    %v180 = vrot.slane %v118, %v179
    %v181 = vlaneseq
    %v182 = vshrl.u32 %v181, 7
    %v183 = vsub.s32 7, %v182
    %v184 = vrot.slane %v118, %v183
    %vm201 = vcmask 261120
    %v203 = vsel %vm201, %v52, 0
    %205 = vmatprep.subr.mxu0 0.0
    %206 = vmatpush1.msra.mxu0 0.0
    %207 = vmatprep.subr.mxu0 0.0
    %208 = vmatpush1.msra.mxu0 0.0
    %209 = vmatprep.subr.mxu0 0.0
    %210 = vmatpush1.msra.mxu0 0.0
    %211 = vmatprep.subr.mxu0 0.0
    %212 = vmatpush1.msra.mxu0 0.0
    %213 = vmatprep.subr.mxu0 0.0
    %214 = vmatpush1.msra.mxu0 0.0
    %215 = vmatprep.subr.mxu0 0.0
    %216 = vmatpush1.msra.mxu0 0.0
    %217 = vmatprep.subr.mxu0 0.0
    %218 = vmatpush1.msra.mxu0 0.0
    %219 = vmatprep.subr.mxu0 0.0
    %220 = vmatpush1.msra.mxu0 0.0
    %221 = vmatprep.subr.mxu0 0.0
    %222 = vmatpush1.msra.mxu0 0.0
    %223 = vmatprep.subr.mxu0 0.0
    %224 = vmatpush1.msra.mxu0 0.0
    %225 = vmatprep.subr.mxu0 0.0
    %226 = vmatpush1.msra.mxu0 0.0
    %227 = vmatprep.subr.mxu0 0.0
    %228 = vmatpush1.msra.mxu0 0.0
    %229 = vmatprep.subr.mxu0 %v102
    %230 = vmatpush1.msra.mxu0 %v101
    %231 = vmatprep.subr.mxu0 %v86
    %232 = vmatpush1.msra.mxu0 %v85
    %233 = vmatprep.subr.mxu0 %v70
    %234 = vmatpush1.msra.mxu0 %v69
    %235 = vmatprep.subr.mxu0 %v54
    %236 = vmatpush1.msra.mxu0 %v53
    %237 = vmatprep.subr.mxu0 0.0
    %238 = vmatpush2.msra.mxu0 0.0
    %239 = vmatprep.subr.mxu0 0.0
    %240 = vmatpush2.msra.mxu0 0.0
    %241 = vmatprep.subr.mxu0 0.0
    %242 = vmatpush2.msra.mxu0 0.0
    %243 = vmatprep.subr.mxu0 0.0
    %244 = vmatpush2.msra.mxu0 0.0
    %245 = vmatprep.subr.mxu0 0.0
    %246 = vmatpush2.msra.mxu0 0.0
    %247 = vmatprep.subr.mxu0 0.0
    %248 = vmatpush2.msra.mxu0 0.0
    %249 = vmatprep.subr.mxu0 0.0
    %250 = vmatpush2.msra.mxu0 0.0
    %251 = vmatprep.subr.mxu0 0.0
    %252 = vmatpush2.msra.mxu0 0.0
    %253 = vmatprep.subr.mxu0 0.0
    %254 = vmatpush2.msra.mxu0 0.0
    %255 = vmatprep.subr.mxu0 0.0
    %256 = vmatpush2.msra.mxu0 0.0
    %257 = vmatprep.subr.mxu0 0.0
    %258 = vmatpush2.msra.mxu0 0.0
    %259 = vmatprep.subr.mxu0 0.0
    %260 = vmatpush2.msra.mxu0 0.0
    %261 = vmatprep.subr.mxu0 0.0
    %262 = vmatpush2.msra.mxu0 0.0
    %263 = vmatprep.subr.mxu0 0.0
    %264 = vmatpush2.msra.mxu0 0.0
    %265 = vmatprep.subr.mxu0 0.0
    %266 = vmatpush2.msra.mxu0 0.0
    %267 = vmatprep.subr.mxu0 0.0
    %268 = vmatpush2.msra.mxu0 0.0
    %269 = vmatprep.mubr.f32.mxu0 0.0
    %270 = vmatmul.mubr.f32.gmra.mxu0 %v203
    %v271 = vpop.f32.mrf.mxu0
    %v272 = vadd.f32 %v124, %v271
    %v273 = vpop.f32.mrf.mxu0
    %v274 = vadd.f32 %v128, %v273
    %275 = vdwg.mxu0
    %276 = vmatprep.subr.mxu0 0.0
    %277 = vmatpush1.msra.mxu0 0.0
    %278 = vmatprep.subr.mxu0 0.0
    %279 = vmatpush1.msra.mxu0 0.0
    %280 = vmatprep.subr.mxu0 0.0
    %281 = vmatpush1.msra.mxu0 0.0
    %282 = vmatprep.subr.mxu0 0.0
    %283 = vmatpush1.msra.mxu0 0.0
    %284 = vmatprep.subr.mxu0 0.0
    %285 = vmatpush1.msra.mxu0 0.0
    %286 = vmatprep.subr.mxu0 0.0
    %287 = vmatpush1.msra.mxu0 0.0
    %288 = vmatprep.subr.mxu0 0.0
    %289 = vmatpush1.msra.mxu0 0.0
    %290 = vmatprep.subr.mxu0 0.0
    %291 = vmatpush1.msra.mxu0 0.0
    %292 = vmatprep.subr.mxu0 0.0
    %293 = vmatpush1.msra.mxu0 0.0
    %294 = vmatprep.subr.mxu0 0.0
    %295 = vmatpush1.msra.mxu0 0.0
    %296 = vmatprep.subr.mxu0 0.0
    %297 = vmatpush1.msra.mxu0 0.0
    %298 = vmatprep.subr.mxu0 0.0
    %299 = vmatpush1.msra.mxu0 0.0
    %300 = vmatprep.subr.mxu0 %v104
    %301 = vmatpush1.msra.mxu0 %v103
    %302 = vmatprep.subr.mxu0 %v88
    %303 = vmatpush1.msra.mxu0 %v87
    %304 = vmatprep.subr.mxu0 %v72
    %305 = vmatpush1.msra.mxu0 %v71
    %306 = vmatprep.subr.mxu0 %v56
    %307 = vmatpush1.msra.mxu0 %v55
    %308 = vmatprep.subr.mxu0 0.0
    %309 = vmatpush2.msra.mxu0 0.0
    %310 = vmatprep.subr.mxu0 0.0
    %311 = vmatpush2.msra.mxu0 0.0
    %312 = vmatprep.subr.mxu0 0.0
    %313 = vmatpush2.msra.mxu0 0.0
    %314 = vmatprep.subr.mxu0 0.0
    %315 = vmatpush2.msra.mxu0 0.0
    %316 = vmatprep.subr.mxu0 0.0
    %317 = vmatpush2.msra.mxu0 0.0
    %318 = vmatprep.subr.mxu0 0.0
    %319 = vmatpush2.msra.mxu0 0.0
    %320 = vmatprep.subr.mxu0 0.0
    %321 = vmatpush2.msra.mxu0 0.0
    %322 = vmatprep.subr.mxu0 0.0
    %323 = vmatpush2.msra.mxu0 0.0
    %324 = vmatprep.subr.mxu0 0.0
    %325 = vmatpush2.msra.mxu0 0.0
    %326 = vmatprep.subr.mxu0 0.0
    %327 = vmatpush2.msra.mxu0 0.0
    %328 = vmatprep.subr.mxu0 0.0
    %329 = vmatpush2.msra.mxu0 0.0
    %330 = vmatprep.subr.mxu0 0.0
    %331 = vmatpush2.msra.mxu0 0.0
    %332 = vmatprep.subr.mxu0 0.0
    %333 = vmatpush2.msra.mxu0 0.0
    %334 = vmatprep.subr.mxu0 0.0
    %335 = vmatpush2.msra.mxu0 0.0
    %336 = vmatprep.subr.mxu0 0.0
    %337 = vmatpush2.msra.mxu0 0.0
    %338 = vmatprep.subr.mxu0 0.0
    %339 = vmatpush2.msra.mxu0 0.0
    %340 = vmatprep.mubr.f32.mxu0 0.0
    %341 = vmatmul.mubr.f32.gmra.mxu0 %v203
    %v342 = vpop.f32.mrf.mxu0
    %v343 = vadd.f32 %v132, %v342
    %v344 = vpop.f32.mrf.mxu0
    %v345 = vadd.f32 %v136, %v344
    %346 = vdwg.mxu0
    %347 = vmatprep.subr.mxu0 0.0
    %348 = vmatpush1.msra.mxu0 0.0
    %349 = vmatprep.subr.mxu0 0.0
    %350 = vmatpush1.msra.mxu0 0.0
    %351 = vmatprep.subr.mxu0 0.0
    %352 = vmatpush1.msra.mxu0 0.0
    %353 = vmatprep.subr.mxu0 0.0
    %354 = vmatpush1.msra.mxu0 0.0
    %355 = vmatprep.subr.mxu0 0.0
    %356 = vmatpush1.msra.mxu0 0.0
    %357 = vmatprep.subr.mxu0 0.0
    %358 = vmatpush1.msra.mxu0 0.0
    %359 = vmatprep.subr.mxu0 0.0
    %360 = vmatpush1.msra.mxu0 0.0
    %361 = vmatprep.subr.mxu0 0.0
    %362 = vmatpush1.msra.mxu0 0.0
    %363 = vmatprep.subr.mxu0 0.0
    %364 = vmatpush1.msra.mxu0 0.0
    %365 = vmatprep.subr.mxu0 0.0
    %366 = vmatpush1.msra.mxu0 0.0
    %367 = vmatprep.subr.mxu0 0.0
    %368 = vmatpush1.msra.mxu0 0.0
    %369 = vmatprep.subr.mxu0 0.0
    %370 = vmatpush1.msra.mxu0 0.0
    %371 = vmatprep.subr.mxu0 %v106
    %372 = vmatpush1.msra.mxu0 %v105
    %373 = vmatprep.subr.mxu0 %v90
    %374 = vmatpush1.msra.mxu0 %v89
    %375 = vmatprep.subr.mxu0 %v74
    %376 = vmatpush1.msra.mxu0 %v73
    %377 = vmatprep.subr.mxu0 %v58
    %378 = vmatpush1.msra.mxu0 %v57
    %379 = vmatprep.subr.mxu0 0.0
    %380 = vmatpush2.msra.mxu0 0.0
    %381 = vmatprep.subr.mxu0 0.0
    %382 = vmatpush2.msra.mxu0 0.0
    %383 = vmatprep.subr.mxu0 0.0
    %384 = vmatpush2.msra.mxu0 0.0
    %385 = vmatprep.subr.mxu0 0.0
    %386 = vmatpush2.msra.mxu0 0.0
    %387 = vmatprep.subr.mxu0 0.0
    %388 = vmatpush2.msra.mxu0 0.0
    %389 = vmatprep.subr.mxu0 0.0
    %390 = vmatpush2.msra.mxu0 0.0
    %391 = vmatprep.subr.mxu0 0.0
    %392 = vmatpush2.msra.mxu0 0.0
    %393 = vmatprep.subr.mxu0 0.0
    %394 = vmatpush2.msra.mxu0 0.0
    %395 = vmatprep.subr.mxu0 0.0
    %396 = vmatpush2.msra.mxu0 0.0
    %397 = vmatprep.subr.mxu0 0.0
    %398 = vmatpush2.msra.mxu0 0.0
    %399 = vmatprep.subr.mxu0 0.0
    %400 = vmatpush2.msra.mxu0 0.0
    %401 = vmatprep.subr.mxu0 0.0
    %402 = vmatpush2.msra.mxu0 0.0
    %403 = vmatprep.subr.mxu0 0.0
    %404 = vmatpush2.msra.mxu0 0.0
    %405 = vmatprep.subr.mxu0 0.0
    %406 = vmatpush2.msra.mxu0 0.0
    %407 = vmatprep.subr.mxu0 0.0
    %408 = vmatpush2.msra.mxu0 0.0
    %409 = vmatprep.subr.mxu0 0.0
    %410 = vmatpush2.msra.mxu0 0.0
    %411 = vmatprep.mubr.f32.mxu0 0.0
    %412 = vmatmul.mubr.f32.gmra.mxu0 %v203
    %v413 = vpop.f32.mrf.mxu0
    %v414 = vadd.f32 %v140, %v413
    %v415 = vpop.f32.mrf.mxu0
    %v416 = vadd.f32 %v144, %v415
    %417 = vdwg.mxu0
    %418 = vmatprep.subr.mxu0 0.0
    %419 = vmatpush1.msra.mxu0 0.0
    %420 = vmatprep.subr.mxu0 0.0
    %421 = vmatpush1.msra.mxu0 0.0
    %422 = vmatprep.subr.mxu0 0.0
    %423 = vmatpush1.msra.mxu0 0.0
    %424 = vmatprep.subr.mxu0 0.0
    %425 = vmatpush1.msra.mxu0 0.0
    %426 = vmatprep.subr.mxu0 0.0
    %427 = vmatpush1.msra.mxu0 0.0
    %428 = vmatprep.subr.mxu0 0.0
    %429 = vmatpush1.msra.mxu0 0.0
    %430 = vmatprep.subr.mxu0 0.0
    %431 = vmatpush1.msra.mxu0 0.0
    %432 = vmatprep.subr.mxu0 0.0
    %433 = vmatpush1.msra.mxu0 0.0
    %434 = vmatprep.subr.mxu0 0.0
    %435 = vmatpush1.msra.mxu0 0.0
    %436 = vmatprep.subr.mxu0 0.0
    %437 = vmatpush1.msra.mxu0 0.0
    %438 = vmatprep.subr.mxu0 0.0
    %439 = vmatpush1.msra.mxu0 0.0
    %440 = vmatprep.subr.mxu0 0.0
    %441 = vmatpush1.msra.mxu0 0.0
    %442 = vmatprep.subr.mxu0 %v108
    %443 = vmatpush1.msra.mxu0 %v107
    %444 = vmatprep.subr.mxu0 %v92
    %445 = vmatpush1.msra.mxu0 %v91
    %446 = vmatprep.subr.mxu0 %v76
    %447 = vmatpush1.msra.mxu0 %v75
    %448 = vmatprep.subr.mxu0 %v60
    %449 = vmatpush1.msra.mxu0 %v59
    %450 = vmatprep.subr.mxu0 0.0
    %451 = vmatpush2.msra.mxu0 0.0
    %452 = vmatprep.subr.mxu0 0.0
    %453 = vmatpush2.msra.mxu0 0.0
    %454 = vmatprep.subr.mxu0 0.0
    %455 = vmatpush2.msra.mxu0 0.0
    %456 = vmatprep.subr.mxu0 0.0
    %457 = vmatpush2.msra.mxu0 0.0
    %458 = vmatprep.subr.mxu0 0.0
    %459 = vmatpush2.msra.mxu0 0.0
    %460 = vmatprep.subr.mxu0 0.0
    %461 = vmatpush2.msra.mxu0 0.0
    %462 = vmatprep.subr.mxu0 0.0
    %463 = vmatpush2.msra.mxu0 0.0
    %464 = vmatprep.subr.mxu0 0.0
    %465 = vmatpush2.msra.mxu0 0.0
    %466 = vmatprep.subr.mxu0 0.0
    %467 = vmatpush2.msra.mxu0 0.0
    %468 = vmatprep.subr.mxu0 0.0
    %469 = vmatpush2.msra.mxu0 0.0
    %470 = vmatprep.subr.mxu0 0.0
    %471 = vmatpush2.msra.mxu0 0.0
    %472 = vmatprep.subr.mxu0 0.0
    %473 = vmatpush2.msra.mxu0 0.0
    %474 = vmatprep.subr.mxu0 0.0
    %475 = vmatpush2.msra.mxu0 0.0
    %476 = vmatprep.subr.mxu0 0.0
    %477 = vmatpush2.msra.mxu0 0.0
    %478 = vmatprep.subr.mxu0 0.0
    %479 = vmatpush2.msra.mxu0 0.0
    %480 = vmatprep.subr.mxu0 0.0
    %481 = vmatpush2.msra.mxu0 0.0
    %482 = vmatprep.mubr.f32.mxu0 0.0
    %483 = vmatmul.mubr.f32.gmra.mxu0 %v203
    %v484 = vpop.f32.mrf.mxu0
    %v485 = vadd.f32 %v148, %v484
    %v486 = vpop.f32.mrf.mxu0
    %v487 = vadd.f32 %v152, %v486
    %488 = vdwg.mxu0
    %489 = vmatprep.subr.mxu0 0.0
    %490 = vmatpush1.msra.mxu0 0.0
    %491 = vmatprep.subr.mxu0 0.0
    %492 = vmatpush1.msra.mxu0 0.0
    %493 = vmatprep.subr.mxu0 0.0
    %494 = vmatpush1.msra.mxu0 0.0
    %495 = vmatprep.subr.mxu0 0.0
    %496 = vmatpush1.msra.mxu0 0.0
    %497 = vmatprep.subr.mxu0 0.0
    %498 = vmatpush1.msra.mxu0 0.0
    %499 = vmatprep.subr.mxu0 0.0
    %500 = vmatpush1.msra.mxu0 0.0
    %501 = vmatprep.subr.mxu0 0.0
    %502 = vmatpush1.msra.mxu0 0.0
    %503 = vmatprep.subr.mxu0 0.0
    %504 = vmatpush1.msra.mxu0 0.0
    %505 = vmatprep.subr.mxu0 0.0
    %506 = vmatpush1.msra.mxu0 0.0
    %507 = vmatprep.subr.mxu0 0.0
    %508 = vmatpush1.msra.mxu0 0.0
    %509 = vmatprep.subr.mxu0 0.0
    %510 = vmatpush1.msra.mxu0 0.0
    %511 = vmatprep.subr.mxu0 0.0
    %512 = vmatpush1.msra.mxu0 0.0
    %513 = vmatprep.subr.mxu0 %v110
    %514 = vmatpush1.msra.mxu0 %v109
    %515 = vmatprep.subr.mxu0 %v94
    %516 = vmatpush1.msra.mxu0 %v93
    %517 = vmatprep.subr.mxu0 %v78
    %518 = vmatpush1.msra.mxu0 %v77
    %519 = vmatprep.subr.mxu0 %v62
    %520 = vmatpush1.msra.mxu0 %v61
    %521 = vmatprep.subr.mxu0 0.0
    %522 = vmatpush2.msra.mxu0 0.0
    %523 = vmatprep.subr.mxu0 0.0
    %524 = vmatpush2.msra.mxu0 0.0
    %525 = vmatprep.subr.mxu0 0.0
    %526 = vmatpush2.msra.mxu0 0.0
    %527 = vmatprep.subr.mxu0 0.0
    %528 = vmatpush2.msra.mxu0 0.0
    %529 = vmatprep.subr.mxu0 0.0
    %530 = vmatpush2.msra.mxu0 0.0
    %531 = vmatprep.subr.mxu0 0.0
    %532 = vmatpush2.msra.mxu0 0.0
    %533 = vmatprep.subr.mxu0 0.0
    %534 = vmatpush2.msra.mxu0 0.0
    %535 = vmatprep.subr.mxu0 0.0
    %536 = vmatpush2.msra.mxu0 0.0
    %537 = vmatprep.subr.mxu0 0.0
    %538 = vmatpush2.msra.mxu0 0.0
    %539 = vmatprep.subr.mxu0 0.0
    %540 = vmatpush2.msra.mxu0 0.0
    %541 = vmatprep.subr.mxu0 0.0
    %542 = vmatpush2.msra.mxu0 0.0
    %543 = vmatprep.subr.mxu0 0.0
    %544 = vmatpush2.msra.mxu0 0.0
    %545 = vmatprep.subr.mxu0 0.0
    %546 = vmatpush2.msra.mxu0 0.0
    %547 = vmatprep.subr.mxu0 0.0
    %548 = vmatpush2.msra.mxu0 0.0
    %549 = vmatprep.subr.mxu0 0.0
    %550 = vmatpush2.msra.mxu0 0.0
    %551 = vmatprep.subr.mxu0 0.0
    %552 = vmatpush2.msra.mxu0 0.0
    %553 = vmatprep.mubr.f32.mxu0 0.0
    %554 = vmatmul.mubr.f32.gmra.mxu0 %v203
    %v555 = vpop.f32.mrf.mxu0
    %v556 = vadd.f32 %v156, %v555
    %v557 = vpop.f32.mrf.mxu0
    %v558 = vadd.f32 %v160, %v557
    %559 = vdwg.mxu0
    %560 = vmatprep.subr.mxu0 0.0
    %561 = vmatpush1.msra.mxu0 0.0
    %562 = vmatprep.subr.mxu0 0.0
    %563 = vmatpush1.msra.mxu0 0.0
    %564 = vmatprep.subr.mxu0 0.0
    %565 = vmatpush1.msra.mxu0 0.0
    %566 = vmatprep.subr.mxu0 0.0
    %567 = vmatpush1.msra.mxu0 0.0
    %568 = vmatprep.subr.mxu0 0.0
    %569 = vmatpush1.msra.mxu0 0.0
    %570 = vmatprep.subr.mxu0 0.0
    %571 = vmatpush1.msra.mxu0 0.0
    %572 = vmatprep.subr.mxu0 0.0
    %573 = vmatpush1.msra.mxu0 0.0
    %574 = vmatprep.subr.mxu0 0.0
    %575 = vmatpush1.msra.mxu0 0.0
    %576 = vmatprep.subr.mxu0 0.0
    %577 = vmatpush1.msra.mxu0 0.0
    %578 = vmatprep.subr.mxu0 0.0
    %579 = vmatpush1.msra.mxu0 0.0
    %580 = vmatprep.subr.mxu0 0.0
    %581 = vmatpush1.msra.mxu0 0.0
    %582 = vmatprep.subr.mxu0 0.0
    %583 = vmatpush1.msra.mxu0 0.0
    %584 = vmatprep.subr.mxu0 %v112
    %585 = vmatpush1.msra.mxu0 %v111
    %586 = vmatprep.subr.mxu0 %v96
    %587 = vmatpush1.msra.mxu0 %v95
    %588 = vmatprep.subr.mxu0 %v80
    %589 = vmatpush1.msra.mxu0 %v79
    %590 = vmatprep.subr.mxu0 %v64
    %591 = vmatpush1.msra.mxu0 %v63
    %592 = vmatprep.subr.mxu0 0.0
    %593 = vmatpush2.msra.mxu0 0.0
    %594 = vmatprep.subr.mxu0 0.0
    %595 = vmatpush2.msra.mxu0 0.0
    %596 = vmatprep.subr.mxu0 0.0
    %597 = vmatpush2.msra.mxu0 0.0
    %598 = vmatprep.subr.mxu0 0.0
    %599 = vmatpush2.msra.mxu0 0.0
    %600 = vmatprep.subr.mxu0 0.0
    %601 = vmatpush2.msra.mxu0 0.0
    %602 = vmatprep.subr.mxu0 0.0
    %603 = vmatpush2.msra.mxu0 0.0
    %604 = vmatprep.subr.mxu0 0.0
    %605 = vmatpush2.msra.mxu0 0.0
    %606 = vmatprep.subr.mxu0 0.0
    %607 = vmatpush2.msra.mxu0 0.0
    %608 = vmatprep.subr.mxu0 0.0
    %609 = vmatpush2.msra.mxu0 0.0
    %610 = vmatprep.subr.mxu0 0.0
    %611 = vmatpush2.msra.mxu0 0.0
    %612 = vmatprep.subr.mxu0 0.0
    %613 = vmatpush2.msra.mxu0 0.0
    %614 = vmatprep.subr.mxu0 0.0
    %615 = vmatpush2.msra.mxu0 0.0
    %616 = vmatprep.subr.mxu0 0.0
    %617 = vmatpush2.msra.mxu0 0.0
    %618 = vmatprep.subr.mxu0 0.0
    %619 = vmatpush2.msra.mxu0 0.0
    %620 = vmatprep.subr.mxu0 0.0
    %621 = vmatpush2.msra.mxu0 0.0
    %622 = vmatprep.subr.mxu0 0.0
    %623 = vmatpush2.msra.mxu0 0.0
    %624 = vmatprep.mubr.f32.mxu0 0.0
    %625 = vmatmul.mubr.f32.gmra.mxu0 %v203
    %v626 = vpop.f32.mrf.mxu0
    %v627 = vadd.f32 %v164, %v626
    %v628 = vpop.f32.mrf.mxu0
    %v629 = vadd.f32 %v168, %v628
    %630 = vdwg.mxu0
    %631 = vmatprep.subr.mxu0 0.0
    %632 = vmatpush1.msra.mxu0 0.0
    %633 = vmatprep.subr.mxu0 0.0
    %634 = vmatpush1.msra.mxu0 0.0
    %635 = vmatprep.subr.mxu0 0.0
    %636 = vmatpush1.msra.mxu0 0.0
    %637 = vmatprep.subr.mxu0 0.0
    %638 = vmatpush1.msra.mxu0 0.0
    %639 = vmatprep.subr.mxu0 0.0
    %640 = vmatpush1.msra.mxu0 0.0
    %641 = vmatprep.subr.mxu0 0.0
    %642 = vmatpush1.msra.mxu0 0.0
    %643 = vmatprep.subr.mxu0 0.0
    %644 = vmatpush1.msra.mxu0 0.0
    %645 = vmatprep.subr.mxu0 0.0
    %646 = vmatpush1.msra.mxu0 0.0
    %647 = vmatprep.subr.mxu0 0.0
    %648 = vmatpush1.msra.mxu0 0.0
    %649 = vmatprep.subr.mxu0 0.0
    %650 = vmatpush1.msra.mxu0 0.0
    %651 = vmatprep.subr.mxu0 0.0
    %652 = vmatpush1.msra.mxu0 0.0
    %653 = vmatprep.subr.mxu0 0.0
    %654 = vmatpush1.msra.mxu0 0.0
    %655 = vmatprep.subr.mxu0 %v114
    %656 = vmatpush1.msra.mxu0 %v113
    %657 = vmatprep.subr.mxu0 %v98
    %658 = vmatpush1.msra.mxu0 %v97
    %659 = vmatprep.subr.mxu0 %v82
    %660 = vmatpush1.msra.mxu0 %v81
    %661 = vmatprep.subr.mxu0 %v66
    %662 = vmatpush1.msra.mxu0 %v65
    %663 = vmatprep.subr.mxu0 0.0
    %664 = vmatpush2.msra.mxu0 0.0
    %665 = vmatprep.subr.mxu0 0.0
    %666 = vmatpush2.msra.mxu0 0.0
    %667 = vmatprep.subr.mxu0 0.0
    %668 = vmatpush2.msra.mxu0 0.0
    %669 = vmatprep.subr.mxu0 0.0
    %670 = vmatpush2.msra.mxu0 0.0
    %671 = vmatprep.subr.mxu0 0.0
    %672 = vmatpush2.msra.mxu0 0.0
    %673 = vmatprep.subr.mxu0 0.0
    %674 = vmatpush2.msra.mxu0 0.0
    %675 = vmatprep.subr.mxu0 0.0
    %676 = vmatpush2.msra.mxu0 0.0
    %677 = vmatprep.subr.mxu0 0.0
    %678 = vmatpush2.msra.mxu0 0.0
    %679 = vmatprep.subr.mxu0 0.0
    %680 = vmatpush2.msra.mxu0 0.0
    %681 = vmatprep.subr.mxu0 0.0
    %682 = vmatpush2.msra.mxu0 0.0
    %683 = vmatprep.subr.mxu0 0.0
    %684 = vmatpush2.msra.mxu0 0.0
    %685 = vmatprep.subr.mxu0 0.0
    %686 = vmatpush2.msra.mxu0 0.0
    %687 = vmatprep.subr.mxu0 0.0
    %688 = vmatpush2.msra.mxu0 0.0
    %689 = vmatprep.subr.mxu0 0.0
    %690 = vmatpush2.msra.mxu0 0.0
    %691 = vmatprep.subr.mxu0 0.0
    %692 = vmatpush2.msra.mxu0 0.0
    %693 = vmatprep.subr.mxu0 0.0
    %694 = vmatpush2.msra.mxu0 0.0
    %695 = vmatprep.mubr.f32.mxu0 0.0
    %696 = vmatmul.mubr.f32.gmra.mxu0 %v203
    %v697 = vpop.f32.mrf.mxu0
    %v698 = vadd.f32 %v172, %v697
    %v699 = vpop.f32.mrf.mxu0
    %v700 = vadd.f32 %v176, %v699
    %701 = vdwg.mxu0
    %702 = vmatprep.subr.mxu0 0.0
    %703 = vmatpush1.msra.mxu0 0.0
    %704 = vmatprep.subr.mxu0 0.0
    %705 = vmatpush1.msra.mxu0 0.0
    %706 = vmatprep.subr.mxu0 0.0
    %707 = vmatpush1.msra.mxu0 0.0
    %708 = vmatprep.subr.mxu0 0.0
    %709 = vmatpush1.msra.mxu0 0.0
    %710 = vmatprep.subr.mxu0 0.0
    %711 = vmatpush1.msra.mxu0 0.0
    %712 = vmatprep.subr.mxu0 0.0
    %713 = vmatpush1.msra.mxu0 0.0
    %714 = vmatprep.subr.mxu0 0.0
    %715 = vmatpush1.msra.mxu0 0.0
    %716 = vmatprep.subr.mxu0 0.0
    %717 = vmatpush1.msra.mxu0 0.0
    %718 = vmatprep.subr.mxu0 0.0
    %719 = vmatpush1.msra.mxu0 0.0
    %720 = vmatprep.subr.mxu0 0.0
    %721 = vmatpush1.msra.mxu0 0.0
    %722 = vmatprep.subr.mxu0 0.0
    %723 = vmatpush1.msra.mxu0 0.0
    %724 = vmatprep.subr.mxu0 0.0
    %725 = vmatpush1.msra.mxu0 0.0
    %726 = vmatprep.subr.mxu0 %v116
    %727 = vmatpush1.msra.mxu0 %v115
    %728 = vmatprep.subr.mxu0 %v100
    %729 = vmatpush1.msra.mxu0 %v99
    %730 = vmatprep.subr.mxu0 %v84
    %731 = vmatpush1.msra.mxu0 %v83
    %732 = vmatprep.subr.mxu0 %v68
    %733 = vmatpush1.msra.mxu0 %v67
    %734 = vmatprep.subr.mxu0 0.0
    %735 = vmatpush2.msra.mxu0 0.0
    %736 = vmatprep.subr.mxu0 0.0
    %737 = vmatpush2.msra.mxu0 0.0
    %738 = vmatprep.subr.mxu0 0.0
    %739 = vmatpush2.msra.mxu0 0.0
    %740 = vmatprep.subr.mxu0 0.0
    %741 = vmatpush2.msra.mxu0 0.0
    %742 = vmatprep.subr.mxu0 0.0
    %743 = vmatpush2.msra.mxu0 0.0
    %744 = vmatprep.subr.mxu0 0.0
    %745 = vmatpush2.msra.mxu0 0.0
    %746 = vmatprep.subr.mxu0 0.0
    %747 = vmatpush2.msra.mxu0 0.0
    %748 = vmatprep.subr.mxu0 0.0
    %749 = vmatpush2.msra.mxu0 0.0
    %750 = vmatprep.subr.mxu0 0.0
    %751 = vmatpush2.msra.mxu0 0.0
    %752 = vmatprep.subr.mxu0 0.0
    %753 = vmatpush2.msra.mxu0 0.0
    %754 = vmatprep.subr.mxu0 0.0
    %755 = vmatpush2.msra.mxu0 0.0
    %756 = vmatprep.subr.mxu0 0.0
    %757 = vmatpush2.msra.mxu0 0.0
    %758 = vmatprep.subr.mxu0 0.0
    %759 = vmatpush2.msra.mxu0 0.0
    %760 = vmatprep.subr.mxu0 0.0
    %761 = vmatpush2.msra.mxu0 0.0
    %762 = vmatprep.subr.mxu0 0.0
    %763 = vmatpush2.msra.mxu0 0.0
    %764 = vmatprep.subr.mxu0 0.0
    %765 = vmatpush2.msra.mxu0 0.0
    %766 = vmatprep.mubr.f32.mxu0 0.0
    %767 = vmatmul.mubr.f32.gmra.mxu0 %v203
    %v768 = vpop.f32.mrf.mxu0
    %v769 = vadd.f32 %v180, %v768
    %v770 = vpop.f32.mrf.mxu0
    %v771 = vadd.f32 %v184, %v770
    %772 = vdwg.mxu0
    %v773 = vmax.f32 %v272, 0.0
    %v774 = vmax.f32 %v274, 0.0
    %v775 = vmax.f32 %v343, 0.0
    %v776 = vmax.f32 %v345, 0.0
    %v777 = vmax.f32 %v414, 0.0
    %v778 = vmax.f32 %v416, 0.0
    %v779 = vmax.f32 %v485, 0.0
    %v780 = vmax.f32 %v487, 0.0
    %v781 = vmax.f32 %v556, 0.0
    %v782 = vmax.f32 %v558, 0.0
    %v783 = vmax.f32 %v627, 0.0
    %v784 = vmax.f32 %v629, 0.0
    %v785 = vmax.f32 %v698, 0.0
    %v786 = vmax.f32 %v700, 0.0
    %v787 = vmax.f32 %v769, 0.0
    %v788 = vmax.f32 %v771, 0.0
    %v805 = vcombine.low %v773, %v774
    %v806 = vcombine.low %v775, %v776
    %v808 = vunpack.c.l.s4 1983009808
    %v809 = vunpack.c.0.s8 %v808
    %v810 = vlaneseq
    %v811 = vshrl.u32 %v810, 7
    %v812 = vsub.s32 %v809, %v811
    %v813 = vrot.slane %v805, %v812
    %v815 = vunpack.c.l.s4 1983009808
    %v816 = vunpack.c.0.s8 %v815
    %v817 = vlaneseq
    %v818 = vshrl.u32 %v817, 7
    %v819 = vsub.s32 %v816, %v818
    %v820 = vrot.slane %v806, %v819
    %v821 = vcombine.low %v813, %v820
    %v822 = vcombine.low %v777, %v778
    %v823 = vcombine.low %v779, %v780
    %v825 = vunpack.c.l.s4 1983009808
    %v826 = vunpack.c.0.s8 %v825
    %v827 = vlaneseq
    %v828 = vshrl.u32 %v827, 7
    %v829 = vsub.s32 %v826, %v828
    %v830 = vrot.slane %v822, %v829
    %v832 = vunpack.c.l.s4 1983009808
    %v833 = vunpack.c.0.s8 %v832
    %v834 = vlaneseq
    %v835 = vshrl.u32 %v834, 7
    %v836 = vsub.s32 %v833, %v835
    %v837 = vrot.slane %v823, %v836
    %v838 = vcombine.low %v830, %v837
    %v839 = vcombine.low %v781, %v782
    %v840 = vcombine.low %v783, %v784
    %v842 = vunpack.c.l.s4 1983009808
    %v843 = vunpack.c.0.s8 %v842
    %v844 = vlaneseq
    %v845 = vshrl.u32 %v844, 7
    %v846 = vsub.s32 %v843, %v845
    %v847 = vrot.slane %v839, %v846
    %v849 = vunpack.c.l.s4 1983009808
    %v850 = vunpack.c.0.s8 %v849
    %v851 = vlaneseq
    %v852 = vshrl.u32 %v851, 7
    %v853 = vsub.s32 %v850, %v852
    %v854 = vrot.slane %v840, %v853
    %v855 = vcombine.low %v847, %v854
    %v856 = vcombine.low %v785, %v786
    %v857 = vcombine.low %v787, %v788
    %v859 = vunpack.c.l.s4 1983009808
    %v860 = vunpack.c.0.s8 %v859
    %v861 = vlaneseq
    %v862 = vshrl.u32 %v861, 7
    %v863 = vsub.s32 %v860, %v862
    %v864 = vrot.slane %v856, %v863
    %v866 = vunpack.c.l.s4 1983009808
    %v867 = vunpack.c.0.s8 %v866
    %v868 = vlaneseq
    %v869 = vshrl.u32 %v868, 7
    %v870 = vsub.s32 %v867, %v869
    %v871 = vrot.slane %v857, %v870
    %v872 = vcombine.low %v864, %v871
    %877 = vst [vmem:[#allocation8] sm:$0xff] %v821
    %878 = vst [vmem:[#allocation8 + $0x8] sm:$0xff] %v838
    %879 = vst [vmem:[#allocation8 + $0x10] sm:$0xff] %v855
    %880 = vst [vmem:[#allocation8 + $0x18] sm:$0xff] %v872
    // Predicated region
    $region26: #{tpu_custom_call.1} parent=1 // pred_check
      _
    $region27: #{tpu_custom_call.1} parent=1 // pred_check_branch
      %882 = sbr.rel (0) target = $region29
    $region28: #{tpu_custom_call.1} parent=1 // pred_region
      %s884 = ssub.s32 512, 512
      %885 = vsyncadd [#allocation4], %s884
      %s887 = sshll.u32 [#allocation8], 4
      %s888 = int_to_ptr.vmem [resolvable:$true] %s887
      %890 = dma.vmem_to_hbm [thread:$0]  %s888, 512, %s3, [#allocation4]
    $region29: #{tpu_custom_call.1} parent=1 // pred_fallthru
      _
    // Predicated region
    $region30: #{tpu_custom_call.1} parent=1 // pred_check
      _
    $region31: #{tpu_custom_call.1} parent=1 // pred_check_branch
      %892 = sbr.rel (0) target = $region33
    $region32: #{tpu_custom_call.1} parent=1 // pred_region
      %893 = dma.done [#allocation4], 512
    $region33: #{tpu_custom_call.1} parent=1 // pred_fallthru
      _
    %894 = vsyncpa [#allocation3], 1
    %895 = vsyncpa [#allocation6], 1
    %896 = vsyncpa [#allocation4], 1

</llo_original>
